<compile_context>
chip_gen: v6e
topology: v6e:2x2x1
jax: 0.10.0
libtpu: 0.0.40
codegen_flags: <defaults>
</compile_context>

<pallas_src>
import jax
import jax.numpy as jnp
from jax.experimental import pallas as pl
from jax.experimental.pallas import tpu as pltpu

NEG_SLOPE = 0.01   # F.leaky_relu default
LANE = 128         # TPU lane width


def predict_kernel(x_ref, w1_ref, b1_ref, w2_ref, b2_ref, o_ref):
    # nn.Dropout is identity at inference time.
    x = x_ref[...]                                                      # (tb, D)  bf16
    h = jnp.dot(x, w1_ref[...], preferred_element_type=jnp.float32)    # (tb, H)  f32
    h = h + b1_ref[...]                                                 # (1, H) broadcast
    h = jnp.maximum(h, NEG_SLOPE * h)                                   # leaky_relu
    y = jnp.dot(h, w2_ref[...], preferred_element_type=jnp.float32)    # (tb, O_pad)
    y = y + b2_ref[...]                                                 # (1, O_pad) broadcast
    o_ref[...] = y.astype(o_ref.dtype)


def _pick_block_b(B):
    """Batch tile: ~1024 rows, multiple of 8, >=2 grid steps when B allows."""
    if B <= 8:
        return max(B, 1)
    if B <= 2048:
        half = (B + 1) // 2                      # at least 2 steps -> v7x megacore
        return min(B, ((half + 7) // 8) * 8)     # f32/bf16 sublane granularity
    return 1024                                  # ~85% of HBM roofline regime


def predict_forward(x, w1, b1, w2, b2, *, block_b=None):
    """x: (B, D) f32; w1: (D, 16); b1: (16,); w2: (16, O); b2: (O,) — weights
    stored pre-transposed as (in_features, out_features)."""
    B, D = x.shape
    H = w1.shape[1]
    O = w2.shape[1]
    if block_b is None:
        block_b = _pick_block_b(B)

    # Lane-dense output: pad the tiny output dim up to a multiple of 128.
    O_pad = ((O + LANE - 1) // LANE) * LANE

    # bf16 inputs for the first (dominant) matmul; f32 accumulate in-kernel.
    x_bf = x.astype(jnp.bfloat16)
    w1_bf = w1.astype(jnp.bfloat16)

    b1_2d = b1.reshape(1, H).astype(jnp.float32)
    w2_pad = jnp.pad(w2.astype(jnp.float32), ((0, 0), (0, O_pad - O)))
    b2_pad = jnp.pad(b2.reshape(1, O).astype(jnp.float32), ((0, 0), (0, O_pad - O)))

    grid = (pl.cdiv(B, block_b),)

    cost = pl.CostEstimate(
        flops=2 * B * (D * H + H * O_pad),
        transcendentals=0,
        bytes_accessed=(B * D * 2 + D * H * 2 + H * 4
                        + H * O_pad * 4 + O_pad * 4 + B * O_pad * 4),
    )

    out_pad = pl.pallas_call(
        predict_kernel,
        out_shape=jax.ShapeDtypeStruct((B, O_pad), jnp.float32),
        grid_spec=pltpu.PrefetchScalarGridSpec(
            num_scalar_prefetch=0,
            grid=grid,
            in_specs=[
                # NOTE: if block_b does not divide B, the padded tail rows of x
                # are garbage but their output rows are never written back.
                pl.BlockSpec((block_b, D), lambda i: (i, 0)),   # x tile (pipelined)
                pl.BlockSpec((D, H), lambda i: (0, 0)),         # w1 (resident)
                pl.BlockSpec((1, H), lambda i: (0, 0)),         # b1
                pl.BlockSpec((H, O_pad), lambda i: (0, 0)),     # w2 (resident, lane-padded)
                pl.BlockSpec((1, O_pad), lambda i: (0, 0)),     # b2
            ],
            out_specs=pl.BlockSpec((block_b, O_pad), lambda i: (i, 0)),
        ),
        compiler_params=pltpu.CompilerParams(
            dimension_semantics=("parallel",),
        ),
        cost_estimate=cost,
    )(x_bf, w1_bf, b1_2d, w2_pad, b2_pad)

    return out_pad[:, :O]


def reference_forward(x, w1, b1, w2, b2):
    # Mirrors the kernel's bf16 quantization of the first matmul inputs.
    h = jnp.dot(x.astype(jnp.bfloat16), w1.astype(jnp.bfloat16),
                preferred_element_type=jnp.float32) + b1
    h = jnp.where(h > 0, h, NEG_SLOPE * h)
    return jnp.dot(h, w2, preferred_element_type=jnp.float32) + b2


if __name__ == "__main__":
    # Small shapes consistent with the module: batch=8, post_fusion_dim=32,
    # hidden=16 (fixed by the module), output_dim=4.
    B, D, H, O = 8, 32, 16, 4

    key = jax.random.PRNGKey(0)
    kx, kw1, kb1, kw2, kb2 = jax.random.split(key, 5)

    x = jax.random.normal(kx, (B, D), dtype=jnp.float32)

    # Deterministic synthetic parameters (nn.Linear shapes, pre-transposed (in, out)).
    w1 = jax.random.normal(kw1, (D, H), dtype=jnp.float32) * (1.0 / jnp.sqrt(D))
    b1 = jax.random.normal(kb1, (H,), dtype=jnp.float32) * 0.1
    w2 = jax.random.normal(kw2, (H, O), dtype=jnp.float32) * (1.0 / jnp.sqrt(H))
    b2 = jax.random.normal(kb2, (O,), dtype=jnp.float32) * 0.1

    out = predict_forward(x, w1, b1, w2, b2)
    out = jax.block_until_ready(out)

    ref = reference_forward(x, w1, b1, w2, b2)
    assert out.shape == (B, O)
    assert jnp.allclose(out, ref, atol=1e-4, rtol=1e-4), "mismatch vs reference"

    print("KERNEL_OK")
</pallas_src>

<mosaic_0001>
module attributes {stable_mosaic.version = 11 : i64} {
  func.func @predict_kernel(%arg0: i32, %arg1: memref<8x32xbf16, #tpu.memory_space<vmem>>, %arg2: memref<32x16xbf16, #tpu.memory_space<vmem>>, %arg3: memref<1x16xf32, #tpu.memory_space<vmem>>, %arg4: memref<16x128xf32, #tpu.memory_space<vmem>>, %arg5: memref<1x128xf32, #tpu.memory_space<vmem>>, %arg6: memref<8x128xf32, #tpu.memory_space<vmem>>) attributes {dimension_semantics = [#tpu.dimension_semantics<parallel>], iteration_bounds = array<i64: 1>, scalar_prefetch = 0 : i64, scratch_operands = 0 : i64, tpu.core_type = #tpu.core_type<tc>, window_params = [{transform_indices = @transform_0, window_bounds = array<i64: 8, 32>}, {pipeline_mode = #tpu.pipeline_mode<synchronous>, transform_indices = @transform_1, window_bounds = array<i64: 32, 16>}, {pipeline_mode = #tpu.pipeline_mode<synchronous>, transform_indices = @transform_2, window_bounds = array<i64: 1, 16>}, {pipeline_mode = #tpu.pipeline_mode<synchronous>, transform_indices = @transform_3, window_bounds = array<i64: 16, 128>}, {pipeline_mode = #tpu.pipeline_mode<synchronous>, transform_indices = @transform_4, window_bounds = array<i64: 1, 128>}, {transform_indices = @transform_5, window_bounds = array<i64: 8, 128>}]} {
    %c0 = arith.constant 0 : index
    %c0_0 = arith.constant 0 : index
    %0 = vector.load %arg1[%c0, %c0_0] : memref<8x32xbf16, #tpu.memory_space<vmem>>, vector<8x32xbf16>
    %c0_1 = arith.constant 0 : index
    %c0_2 = arith.constant 0 : index
    %1 = vector.load %arg2[%c0_1, %c0_2] : memref<32x16xbf16, #tpu.memory_space<vmem>>, vector<32x16xbf16>
    %cst = arith.constant dense<0.000000e+00> : vector<8x16xf32>
    %2 = tpu.matmul %0, %1, %cst {dimension_numbers = #tpu.dot_dimension_numbers<[1], [0], [0], [1], [0, 0, 1, 1], [], []>} : vector<8x32xbf16>, vector<32x16xbf16>, vector<8x16xf32> -> vector<8x16xf32>
    %c0_3 = arith.constant 0 : index
    %c0_4 = arith.constant 0 : index
    %3 = vector.load %arg3[%c0_3, %c0_4] : memref<1x16xf32, #tpu.memory_space<vmem>>, vector<1x16xf32>
    %4 = vector.broadcast %3 : vector<1x16xf32> to vector<8x16xf32>
    %5 = arith.addf %2, %4 : vector<8x16xf32>
    %cst_5 = arith.constant 0.00999999977 : f32
    %6 = vector.broadcast %cst_5 : f32 to vector<8x16xf32>
    %7 = arith.mulf %6, %5 : vector<8x16xf32>
    %8 = arith.maximumf %5, %7 : vector<8x16xf32>
    %c0_6 = arith.constant 0 : index
    %c0_7 = arith.constant 0 : index
    %9 = vector.load %arg4[%c0_6, %c0_7] : memref<16x128xf32, #tpu.memory_space<vmem>>, vector<16x128xf32>
    %cst_8 = arith.constant dense<0.000000e+00> : vector<8x128xf32>
    %10 = tpu.matmul %8, %9, %cst_8 {dimension_numbers = #tpu.dot_dimension_numbers<[1], [0], [0], [1], [0, 0, 1, 1], [], []>} : vector<8x16xf32>, vector<16x128xf32>, vector<8x128xf32> -> vector<8x128xf32>
    %c0_9 = arith.constant 0 : index
    %c0_10 = arith.constant 0 : index
    %11 = vector.load %arg5[%c0_9, %c0_10] : memref<1x128xf32, #tpu.memory_space<vmem>>, vector<1x128xf32>
    %12 = vector.broadcast %11 : vector<1x128xf32> to vector<8x128xf32>
    %13 = arith.addf %10, %12 : vector<8x128xf32>
    %c0_11 = arith.constant 0 : index
    %c0_12 = arith.constant 0 : index
    %14 = vector.load %arg6[%c0_11, %c0_12] : memref<8x128xf32, #tpu.memory_space<vmem>>, vector<8x128xf32>
    tpu.vector_store %arg6[%c0_11, %c0_12], %13 {strides = array<i32>} : memref<8x128xf32, #tpu.memory_space<vmem>>, vector<8x128xf32>,
    return
  }
  func.func @transform_0(%arg0: i32) -> (i32, i32) {
    %c0_i32 = arith.constant 0 : i32
    %c0_i32_0 = arith.constant 0 : i32
    return %arg0, %c0_i32 : i32, i32
  }
  func.func @transform_1(%arg0: i32) -> (i32, i32) {
    %c0_i32 = arith.constant 0 : i32
    %c0_i32_0 = arith.constant 0 : i32
    %c0_i32_1 = arith.constant 0 : i32
    return %c0_i32, %c0_i32_0 : i32, i32
  }
  func.func @transform_2(%arg0: i32) -> (i32, i32) {
    %c0_i32 = arith.constant 0 : i32
    %c0_i32_0 = arith.constant 0 : i32
    %c0_i32_1 = arith.constant 0 : i32
    return %c0_i32, %c0_i32_0 : i32, i32
  }
  func.func @transform_3(%arg0: i32) -> (i32, i32) {
    %c0_i32 = arith.constant 0 : i32
    %c0_i32_0 = arith.constant 0 : i32
    %c0_i32_1 = arith.constant 0 : i32
    return %c0_i32, %c0_i32_0 : i32, i32
  }
  func.func @transform_4(%arg0: i32) -> (i32, i32) {
    %c0_i32 = arith.constant 0 : i32
    %c0_i32_0 = arith.constant 0 : i32
    %c0_i32_1 = arith.constant 0 : i32
    return %c0_i32, %c0_i32_0 : i32, i32
  }
  func.func @transform_5(%arg0: i32) -> (i32, i32) {
    %c0_i32 = arith.constant 0 : i32
    %c0_i32_0 = arith.constant 0 : i32
    return %arg0, %c0_i32 : i32, i32
  }
}

</mosaic_0001>

<llo_original>
// kernel: tpu_custom_call.1
$region0: #{tpu_custom_call.1}
  #allocation0 [shape = 'u32[]', space=smem, size = 0x4, offset = 0x4, fixed_abs, tag = 'smem constant byte address 0x4 - core index']
  #allocation1 [shape = 'u32[144,128]{1,0:T(1,128)}', space=vmem, size = 0x12000, scoped, tag = 'internal scratch']
  %s0 = inlined_call_operand.vmem [shape: bf16[8,32], index: 0, kind: input, shape index: {}]
  %s1 = inlined_call_operand.vmem [shape: bf16[32,16], index: 1, kind: input, shape index: {}]
  %s2 = inlined_call_operand.vmem [shape: f32[1,16], index: 2, kind: input, shape index: {}]
  %s3 = inlined_call_operand.vmem [shape: f32[16,128], index: 3, kind: input, shape index: {}]
  %s4 = inlined_call_operand.vmem [shape: f32[1,128], index: 4, kind: input, shape index: {}]
  %s5 = inlined_call_operand.hbm [shape: f32[8,128], index: 5, kind: output, shape index: {}]
  %s6 = sld [smem:[#allocation0]]
  $region30: #{tpu_custom_call.1} parent=0
    _
  %s8 = ssub.s32 1, %s6
  %s9 = scalar_select 0, %s8, %s6
  $region1: #{tpu_custom_call.1} parent=0
    #allocation2 [shape = 'u8[4096]{0}', space=vmem, size = 0x1000, scoped, tag = 'output window, operand 0, single buffered']
    #allocation3 [shape = 's32[1]{0}', space=sflag, size = 0x4, scoped, tag = 'scoped memory for tpu_custom_call.1']
    %10 = vsyncpa [#allocation3], 0
    // Predicated region
    $region2: #{tpu_custom_call.1} parent=1 // pred_check
      _
    $region3: #{tpu_custom_call.1} parent=1 // pred_check_branch
      %12 = sbr.rel (0) target = $region5
    $region4: #{tpu_custom_call.1} parent=1 // pred_region
      _
    $region5: #{tpu_custom_call.1} parent=1 // pred_fallthru
      _
    // Predicated region
    $region6: #{tpu_custom_call.1} parent=1 // pred_check
      _
    $region7: #{tpu_custom_call.1} parent=1 // pred_check_branch
      %14 = sbr.rel (0) target = $region9
    $region8: #{tpu_custom_call.1} parent=1 // pred_region
      _
    $region9: #{tpu_custom_call.1} parent=1 // pred_fallthru
      _
    // Predicated region
    $region10: #{tpu_custom_call.1} parent=1 // pred_check
      _
    $region11: #{tpu_custom_call.1} parent=1 // pred_check_branch
      %16 = sbr.rel (0) target = $region13
    $region12: #{tpu_custom_call.1} parent=1 // pred_region
      _
    $region13: #{tpu_custom_call.1} parent=1 // pred_fallthru
      _
    // Predicated region
    $region14: #{tpu_custom_call.1} parent=1 // pred_check
      _
    $region15: #{tpu_custom_call.1} parent=1 // pred_check_branch
      %18 = sbr.rel (0) target = $region17
    $region16: #{tpu_custom_call.1} parent=1 // pred_region
      _
    $region17: #{tpu_custom_call.1} parent=1 // pred_fallthru
      _
    // Predicated region
    $region18: #{tpu_custom_call.1} parent=1 // pred_check
      _
    $region19: #{tpu_custom_call.1} parent=1 // pred_check_branch
      %20 = sbr.rel (0) target = $region21
    $region20: #{tpu_custom_call.1} parent=1 // pred_region
      _
    $region21: #{tpu_custom_call.1} parent=1 // pred_fallthru
      _
    %v22 = vld [vmem:[%s0] sm:$0xf]
    %v23 = vld [vmem:[%s1] sm:$0xf]
    %v24 = vld [vmem:[%s1 + $0x4] sm:$0xf]
    %v25 = vld [vmem:[%s1 + $0x8] sm:$0xf]
    %v26 = vld [vmem:[%s1 + $0xc] sm:$0xf]
    %v27 = vld [vmem:[%s2] sm:$0x1]
    %v29 = vlaneseq
    %v30 = vshrl.u32 %v29, 7
    %v31 = vsub.s32 0, %v30
    %v32 = vrot.slane %v27, %v31
    %v38 = vunpack.c.l.b16 %v23
    %v39 = vunpack.c.l.b16 %v24
    %v40 = vunpack.c.l.b16 %v25
    %v41 = vunpack.c.l.b16 %v26
    %v42 = vpack.c.b16 %v39, %v38
    %v43 = vpack.c.b16 %v41, %v40
    %vm46 = vcmask 261120
    %v48 = vsel %vm46, %v22, 0
    %50 = vmatprep.subr.bf16.mxu0 0
    %51 = vmatpush1.bf16.msra.mxu0 0
    %52 = vmatprep.subr.bf16.mxu0 0
    %53 = vmatpush1.bf16.msra.mxu0 0
    %54 = vmatprep.subr.bf16.mxu0 0
    %55 = vmatpush1.bf16.msra.mxu0 0
    %56 = vmatprep.subr.bf16.mxu0 0
    %57 = vmatpush1.bf16.msra.mxu0 0
    %58 = vmatprep.subr.bf16.mxu0 0
    %59 = vmatpush1.bf16.msra.mxu0 0
    %60 = vmatprep.subr.bf16.mxu0 0
    %61 = vmatpush1.bf16.msra.mxu0 0
    %62 = vmatprep.subr.bf16.mxu0 0
    %63 = vmatpush1.bf16.msra.mxu0 %v43
    %64 = vmatprep.subr.bf16.mxu0 0
    %65 = vmatpush1.bf16.msra.mxu0 %v42
    %66 = vmatprep.subr.bf16.mxu0 0
    %67 = vmatpush2.bf16.msra.mxu0 0
    %68 = vmatprep.subr.bf16.mxu0 0
    %69 = vmatpush2.bf16.msra.mxu0 0
    %70 = vmatprep.subr.bf16.mxu0 0
    %71 = vmatpush2.bf16.msra.mxu0 0
    %72 = vmatprep.subr.bf16.mxu0 0
    %73 = vmatpush2.bf16.msra.mxu0 0
    %74 = vmatprep.subr.bf16.mxu0 0
    %75 = vmatpush2.bf16.msra.mxu0 0
    %76 = vmatprep.subr.bf16.mxu0 0
    %77 = vmatpush2.bf16.msra.mxu0 0
    %78 = vmatprep.subr.bf16.mxu0 0
    %79 = vmatpush2.bf16.msra.mxu0 0
    %80 = vmatprep.subr.bf16.mxu0 0
    %81 = vmatpush2.bf16.msra.mxu0 0
    %82 = vmatprep.mubr.bf16.mxu0 0
    %83 = vmatmul.mubr.bf16.gmra.mxu0 %v48
    %v84 = vpop.f32.mrf.mxu0
    %v85 = vadd.f32 %v32, %v84
    %v86 = vpop.f32.mrf.mxu0
    %v87 = vpop.f32.mrf.mxu0
    %v88 = vpop.f32.mrf.mxu0
    %89 = vdwg.mxu0
    %v90 = vmul.f32 %v85, 0.01
    %v91 = vmax.f32 %v85, %v90
    %v92 = vld [vmem:[%s3] sm:$0xff]
    %v93 = vld [vmem:[%s3 + $0x8] sm:$0xff]
    %v94 = vld [vmem:[%s4] sm:$0x1]
    %v96 = vlaneseq
    %v97 = vshrl.u32 %v96, 7
    %v98 = vsub.s32 0, %v97
    %v99 = vrot.slane %v94, %v98
    %vm101 = vcmask 130048
    %v103 = vsel %vm101, %v91, 0
    %105 = vmatprep.subr.mxu0 0.0
    %106 = vmatpush1.msra.mxu0 0.0
    %107 = vmatprep.subr.mxu0 0.0
    %108 = vmatpush1.msra.mxu0 0.0
    %109 = vmatprep.subr.mxu0 0.0
    %110 = vmatpush1.msra.mxu0 0.0
    %111 = vmatprep.subr.mxu0 0.0
    %112 = vmatpush1.msra.mxu0 0.0
    %113 = vmatprep.subr.mxu0 0.0
    %114 = vmatpush1.msra.mxu0 0.0
    %115 = vmatprep.subr.mxu0 0.0
    %116 = vmatpush1.msra.mxu0 0.0
    %117 = vmatprep.subr.mxu0 0.0
    %118 = vmatpush1.msra.mxu0 0.0
    %119 = vmatprep.subr.mxu0 0.0
    %120 = vmatpush1.msra.mxu0 0.0
    %121 = vmatprep.subr.mxu0 0.0
    %122 = vmatpush1.msra.mxu0 0.0
    %123 = vmatprep.subr.mxu0 0.0
    %124 = vmatpush1.msra.mxu0 0.0
    %125 = vmatprep.subr.mxu0 0.0
    %126 = vmatpush1.msra.mxu0 0.0
    %127 = vmatprep.subr.mxu0 0.0
    %128 = vmatpush1.msra.mxu0 0.0
    %129 = vmatprep.subr.mxu0 0.0
    %130 = vmatpush1.msra.mxu0 0.0
    %131 = vmatprep.subr.mxu0 0.0
    %132 = vmatpush1.msra.mxu0 0.0
    %133 = vmatprep.subr.mxu0 0.0
    %134 = vmatpush1.msra.mxu0 %v93
    %135 = vmatprep.subr.mxu0 0.0
    %136 = vmatpush1.msra.mxu0 %v92
    %137 = vmatprep.subr.mxu0 0.0
    %138 = vmatpush2.msra.mxu0 0.0
    %139 = vmatprep.subr.mxu0 0.0
    %140 = vmatpush2.msra.mxu0 0.0
    %141 = vmatprep.subr.mxu0 0.0
    %142 = vmatpush2.msra.mxu0 0.0
    %143 = vmatprep.subr.mxu0 0.0
    %144 = vmatpush2.msra.mxu0 0.0
    %145 = vmatprep.subr.mxu0 0.0
    %146 = vmatpush2.msra.mxu0 0.0
    %147 = vmatprep.subr.mxu0 0.0
    %148 = vmatpush2.msra.mxu0 0.0
    %149 = vmatprep.subr.mxu0 0.0
    %150 = vmatpush2.msra.mxu0 0.0
    %151 = vmatprep.subr.mxu0 0.0
    %152 = vmatpush2.msra.mxu0 0.0
    %153 = vmatprep.subr.mxu0 0.0
    %154 = vmatpush2.msra.mxu0 0.0
    %155 = vmatprep.subr.mxu0 0.0
    %156 = vmatpush2.msra.mxu0 0.0
    %157 = vmatprep.subr.mxu0 0.0
    %158 = vmatpush2.msra.mxu0 0.0
    %159 = vmatprep.subr.mxu0 0.0
    %160 = vmatpush2.msra.mxu0 0.0
    %161 = vmatprep.subr.mxu0 0.0
    %162 = vmatpush2.msra.mxu0 0.0
    %163 = vmatprep.subr.mxu0 0.0
    %164 = vmatpush2.msra.mxu0 0.0
    %165 = vmatprep.subr.mxu0 0.0
    %166 = vmatpush2.msra.mxu0 0.0
    %167 = vmatprep.subr.mxu0 0.0
    %168 = vmatpush2.msra.mxu0 0.0
    %169 = vmatprep.mubr.f32.mxu0 0.0
    %170 = vmatmul.mubr.f32.gmra.mxu0 %v103
    %v171 = vpop.f32.mrf.mxu0
    %v172 = vadd.f32 %v99, %v171
    %v173 = vpop.f32.mrf.mxu0
    %174 = vdwg.mxu0
    %175 = vst [vmem:[#allocation2] sm:$0xff] %v172
    // Predicated region
    $region22: #{tpu_custom_call.1} parent=1 // pred_check
      _
    $region23: #{tpu_custom_call.1} parent=1 // pred_check_branch
      %177 = sbr.rel (0) target = $region25
    $region24: #{tpu_custom_call.1} parent=1 // pred_region
      %s179 = ssub.s32 128, 128
      %180 = vsyncadd [#allocation3], %s179
      %s182 = sshll.u32 [#allocation2], 4
      %s183 = int_to_ptr.vmem [resolvable:$true] %s182
      %185 = dma.vmem_to_hbm [thread:$0]  %s183, 128, %s5, [#allocation3]
    $region25: #{tpu_custom_call.1} parent=1 // pred_fallthru
      _
    // Predicated region
    $region26: #{tpu_custom_call.1} parent=1 // pred_check
      _
    $region27: #{tpu_custom_call.1} parent=1 // pred_check_branch
      %187 = sbr.rel (0) target = $region29
    $region28: #{tpu_custom_call.1} parent=1 // pred_region
      %188 = dma.done [#allocation3], 128
    $region29: #{tpu_custom_call.1} parent=1 // pred_fallthru
      _
    %189 = vsyncpa [#allocation3], 1

</llo_original>
